<compile_context>
chip_gen: v5e
topology: v5e:2x2
jax: 0.10.0
libtpu: 0.0.40
codegen_flags: <defaults>
</compile_context>

<pallas_src>
import jax
import jax.numpy as jnp
from jax.experimental import pallas as pl
from jax.experimental.pallas import tpu as pltpu

_LANE = 128


def _softmax_kernel(x_ref, o_ref):
    # x_ref/o_ref: (TR, Wp) tile in VMEM.  Numerically stable softmax on lanes.
    x = x_ref[...]
    if x.dtype != jnp.float32:  # no-op for f32 inputs
        x = x.astype(jnp.float32)
    m = jnp.max(x, axis=-1, keepdims=True)
    e = jnp.exp(x - m)
    s = jnp.sum(e, axis=-1, keepdims=True)
    # Exact divide: free under the HBM roofline, avoids approx-reciprocal error.
    o_ref[...] = (e / s).astype(o_ref.dtype)


def _min_grid_steps():
    """Generation-aware floor on grid steps.
    v7x (2 TCs): >=8 so each core pipelines >=4 steps.
    v6e: >=4 steps for DMA/compute overlap.
    v5e and older: keep large tiles (>=2) -- per-step overhead dominates there."""
    try:
        kind = jax.devices()[0].device_kind.lower()
    except Exception:
        return 4
    for tag in ("v2", "v3", "v4", "v5"):
        if tag in kind:
            return 2
    if "v6" in kind:
        return 4
    return 8  # v7x / unknown newer chips


def _pick_tile_rows(rows_sub, w_pad, itemsize, min_steps, target_bytes=2 << 20):
    """Tile rows (multiple of the sublane packing).  Direct arithmetic, no
    divisor search: caller pads rows up to a multiple of the returned tile."""
    sublane = max(8, 32 // max(1, itemsize))
    n_groups = max(1, rows_sub // sublane)            # sublane-groups available
    by_bytes = max(1, target_bytes // max(1, sublane * w_pad * itemsize))
    by_steps = max(1, pl.cdiv(n_groups, min_steps))   # enforce >= min_steps blocks
    cap = max(1, min(n_groups, by_bytes, by_steps))
    return cap * sublane


def softmax_last_dim(x):
    """softmax(x, dim=-1) as a Pallas TPU kernel (matches torch.nn.functional.softmax)."""
    orig_shape = x.shape
    w = orig_shape[-1]
    rows = 1
    for d in orig_shape[:-1]:
        rows *= d
    x2 = x.reshape(rows, w)

    itemsize = jnp.dtype(x.dtype).itemsize
    sublane = max(8, 32 // max(1, itemsize))

    # Lane-dense W (avoids masked partial stores for W % 128 != 0).
    wp = ((w + _LANE - 1) // _LANE) * _LANE

    # Rows: pad to sublane multiple, pick a tile, pad to a tile multiple.
    rows_sub = ((rows + sublane - 1) // sublane) * sublane
    tr = _pick_tile_rows(rows_sub, wp, itemsize, _min_grid_steps())
    rows_p = ((rows_sub + tr - 1) // tr) * tr
    grid = (rows_p // tr,)

    padded = (rows_p, wp) != (rows, w)
    if padded:
        fill = jnp.finfo(x.dtype).min if jnp.issubdtype(x.dtype, jnp.floating) else 0
        x2 = jnp.pad(x2, ((0, rows_p - rows), (0, wp - w)), constant_values=fill)

    # Right-sized VMEM budget: double-buffered in/out blocks + f32 intermediates.
    block_bytes = tr * wp * itemsize
    f32_block = tr * wp * 4
    footprint = 2 * 2 * block_bytes + 4 * f32_block
    vmem_limit = int(min(64 << 20, max(8 << 20, 2 * footprint)))

    out2 = pl.pallas_call(
        _softmax_kernel,
        out_shape=jax.ShapeDtypeStruct((rows_p, wp), x.dtype),
        grid=grid,
        in_specs=[pl.BlockSpec((tr, wp), lambda i: (i, 0))],
        out_specs=pl.BlockSpec((tr, wp), lambda i: (i, 0)),
        compiler_params=pltpu.CompilerParams(
            dimension_semantics=("parallel",),
            vmem_limit_bytes=vmem_limit,
        ),
    )(x2)

    if padded:
        out2 = out2[:rows, :w]
    return out2.reshape(orig_shape)


if __name__ == "__main__":
    key = jax.random.PRNGKey(0)
    # Shape implied by the module: [1, 4, 384, 384]
    x262 = jax.random.normal(key, (1, 4, 384, 384), dtype=jnp.float32)

    y = softmax_last_dim(x262)
    jax.block_until_ready(y)

    y_ref = jax.nn.softmax(x262, axis=-1)
    assert jnp.allclose(y, y_ref, atol=1e-5, rtol=1e-5), "softmax mismatch"
    assert jnp.allclose(jnp.sum(y, axis=-1), 1.0, atol=1e-5), "rows don't sum to 1"

    # Robustness: non-multiple rows (60) and non-multiple W (100) exercise the
    # padding path; result must still match the reference exactly.
    x_small = jax.random.normal(jax.random.PRNGKey(1), (2, 3, 10, 100),
                                dtype=jnp.float32)
    y_small = softmax_last_dim(x_small)
    jax.block_until_ready(y_small)
    assert jnp.allclose(y_small, jax.nn.softmax(x_small, axis=-1),
                        atol=1e-5, rtol=1e-5), "padded-shape softmax mismatch"

    print("KERNEL_OK")
</pallas_src>

<mosaic_0001>
module attributes {stable_mosaic.version = 11 : i64} {
  func.func @_softmax_kernel(%arg0: i32, %arg1: memref<192x384xf32, #tpu.memory_space<vmem>>, %arg2: memref<192x384xf32, #tpu.memory_space<vmem>>) attributes {dimension_semantics = [#tpu.dimension_semantics<parallel>], iteration_bounds = array<i64: 8>, scalar_prefetch = 0 : i64, scratch_operands = 0 : i64, tpu.core_type = #tpu.core_type<tc>, window_params = [{transform_indices = @transform_0, window_bounds = array<i64: 192, 384>}, {transform_indices = @transform_1, window_bounds = array<i64: 192, 384>}]} {
    %c0 = arith.constant 0 : index
    %c0_0 = arith.constant 0 : index
    %0 = vector.load %arg1[%c0, %c0_0] : memref<192x384xf32, #tpu.memory_space<vmem>>, vector<192x384xf32>
    %cst = arith.constant dense<0xFF800000> : vector<192xf32>
    %1 = vector.multi_reduction <maximumf>, %0, %cst [1] : vector<192x384xf32> to vector<192xf32>
    %2 = vector.shape_cast %1 : vector<192xf32> to vector<192x1xf32>
    %3 = vector.broadcast %2 : vector<192x1xf32> to vector<192x384xf32>
    %4 = arith.subf %0, %3 : vector<192x384xf32>
    %5 = math.exp %4 : vector<192x384xf32>
    %cst_1 = arith.constant dense<0.000000e+00> : vector<192xf32>
    %6 = vector.multi_reduction <add>, %5, %cst_1 [1] : vector<192x384xf32> to vector<192xf32>
    %7 = vector.shape_cast %6 : vector<192xf32> to vector<192x1xf32>
    %8 = vector.broadcast %7 : vector<192x1xf32> to vector<192x384xf32>
    %9 = arith.divf %5, %8 : vector<192x384xf32>
    %c0_2 = arith.constant 0 : index
    %c0_3 = arith.constant 0 : index
    %10 = vector.load %arg2[%c0_2, %c0_3] : memref<192x384xf32, #tpu.memory_space<vmem>>, vector<192x384xf32>
    tpu.vector_store %arg2[%c0_2, %c0_3], %9 {strides = array<i32>} : memref<192x384xf32, #tpu.memory_space<vmem>>, vector<192x384xf32>,
    return
  }
  func.func @transform_0(%arg0: i32) -> (i32, i32) {
    %c0_i32 = arith.constant 0 : i32
    %c0_i32_0 = arith.constant 0 : i32
    return %arg0, %c0_i32 : i32, i32
  }
  func.func @transform_1(%arg0: i32) -> (i32, i32) {
    %c0_i32 = arith.constant 0 : i32
    %c0_i32_0 = arith.constant 0 : i32
    return %arg0, %c0_i32 : i32, i32
  }
}

</mosaic_0001>

<llo_original>
// kernel: tpu_custom_call.1
$region0: #{tpu_custom_call.1}
  #allocation0 [shape = 'u32[]', space=smem, size = 0x4, offset = 0x4, fixed_abs, tag = 'smem constant byte address 0x4 - core index']
  #allocation1 [shape = 'u32[72,128]{1,0:T(1,128)}', space=vmem, size = 0x9000, scoped, tag = 'internal scratch']
  %s0 = inlined_call_operand.hbm [shape: f32[1536,384], index: 0, kind: input, shape index: {}]
  %s1 = inlined_call_operand.hbm [shape: f32[1536,384], index: 1, kind: output, shape index: {}]
  %s2 = sld [smem:[#allocation0]]
  $region41: #{tpu_custom_call.1} parent=0
    _
  %s4 = ssub.s32 1, %s2
  %s5 = scalar_select 0, %s4, %s2
  $region1: #{tpu_custom_call.1} parent=0
    #allocation2 [shape = 'u8[589824]{0}', space=vmem, size = 0x90000, scoped, tag = 'input window, operand 0']
    #allocation3 [shape = 's32[2]{0}', space=sflag, size = 0x8, scoped, tag = 'scoped memory for tpu_custom_call.1']
    #allocation4 [shape = 's32[2]{0}', space=sflag, size = 0x8, scoped, tag = 'scoped memory for tpu_custom_call.1']
    #allocation5 [shape = 'u8[589824]{0}', space=vmem, size = 0x90000, scoped, tag = 'output window, operand 0']
    %6 = vsyncpa [#allocation3], 0
    %s7 = scalar_lea.sflag [#allocation3], 1
    %8 = vsyncpa %s7, 0
    %9 = vsyncpa [#allocation4], 0
    %s10 = scalar_lea.sflag [#allocation4], 1
    %11 = vsyncpa %s10, 0
    loop: start=0, step=1, limit=10
    $region2: #{tpu_custom_call.1} parent=1 // loop_pre_header
      _
    $region3: #{tpu_custom_call.1} parent=1 // loop_header
      %s13 = sphi 0, %s17
      %p14 = scmp.ge.s32.totalorder %s13, 10
      %s23 = sphi 0, %s25
      %s26 = sphi 0, %s23
      %s27 = sphi 0, %s26
      %s43 = sphi 0, %s27
      %s49 = sphi 0, %s51
      %s52 = sphi 0, %s49
      %s53 = sphi 0, %s52
      %s69 = sphi 0, %s53
    $region4: #{tpu_custom_call.1} parent=1 // loop_header_branch
      %16 = sbr.rel (%p14) target = $region8
    $region5: #{tpu_custom_call.1} parent=1 // loop_body
      %s18 = ssub.s32 %s13, 1
      %s19 = ssub.s32 %s13, 2
      %s20 = sadd.s32 %s13, 1
      %s21 = ssub.s32 %s13, %s20
      %p22 = scmp.eq.s32.totalorder %s21, 0
      %s24 = sadd.s32 %s23, 1
      %s25 = scalar_select %p22, %s23, %s24
      %p28 = pneg %p22
      %p29 = scmp.eq.s32.totalorder %s13, 7
      %p30 = por %p28, %p29
      %p31 = scmp.ne.s32.totalorder %s23, %s26
      %p32 = scmp.eq.s32.totalorder %s13, 0
      %p33 = por %p31, %p32
      %p34 = scmp.ne.s32.totalorder %s23, %s26
      %p35 = scmp.eq.s32.totalorder %s18, 7
      %p36 = por %p34, %p35
      %p37 = scmp.ne.s32.totalorder %s26, %s27
      %p38 = scmp.eq.s32.totalorder %s18, 0
      %p39 = por %p37, %p38
      %p40 = scmp.ne.s32.totalorder %s26, %s27
      %p41 = scmp.eq.s32.totalorder %s19, 7
      %p42 = por %p40, %p41
      %p44 = scmp.ne.s32.totalorder %s27, %s43
      %p45 = scmp.eq.s32.totalorder %s19, 0
      %p46 = por %p44, %p45
      %s47 = ssub.s32 %s13, %s20
      %p48 = scmp.eq.s32.totalorder %s47, 0
      %s50 = sadd.s32 %s49, 1
      %s51 = scalar_select %p48, %s49, %s50
      %p54 = pneg %p48
      %p55 = scmp.eq.s32.totalorder %s13, 7
      %p56 = por %p54, %p55
      %p57 = scmp.ne.s32.totalorder %s49, %s52
      %p58 = scmp.eq.s32.totalorder %s13, 0
      %p59 = por %p57, %p58
      %p60 = scmp.ne.s32.totalorder %s49, %s52
      %p61 = scmp.eq.s32.totalorder %s18, 7
      %p62 = por %p60, %p61
      %p63 = scmp.ne.s32.totalorder %s52, %s53
      %p64 = scmp.eq.s32.totalorder %s18, 0
      %p65 = por %p63, %p64
      %p66 = scmp.ne.s32.totalorder %s52, %s53
      %p67 = scmp.eq.s32.totalorder %s19, 7
      %p68 = por %p66, %p67
      %p70 = scmp.ne.s32.totalorder %s53, %s69
      %p71 = scmp.eq.s32.totalorder %s19, 0
      %p72 = por %p70, %p71
      %p73 = scmp.le.s32.totalorder 1, %s13
      %p74 = scmp.lt.s32.totalorder %s13, 9
      %p75 = pnand %p73, %p74
      %p76 = pneg %p75
      // Predicated region
      $region9: #{tpu_custom_call.1} parent=5 // pred_check
        _
      $region10: #{tpu_custom_call.1} parent=5 // pred_check_branch
        %78 = sbr.rel (%p75) target = $region12
      $region11: #{tpu_custom_call.1} parent=5 // pred_region
        %s79 = ssub.s32 %s13, 1
      $region12: #{tpu_custom_call.1} parent=5 // pred_fallthru
        _
      %p80 = scmp.lt.s32.totalorder %s13, 8
      // Predicated region
      $region13: #{tpu_custom_call.1} parent=5 // pred_check
        %p81 = pneg %p80
      $region14: #{tpu_custom_call.1} parent=5 // pred_check_branch
        %83 = sbr.rel (%p81) target = $region16
      $region15: #{tpu_custom_call.1} parent=5 // pred_region
        // Predicated region
        $region17: #{tpu_custom_call.1} parent=15 // pred_check
          %p84 = pneg %p33
        $region18: #{tpu_custom_call.1} parent=15 // pred_check_branch
          %86 = sbr.rel (%p84) target = $region20
        $region19: #{tpu_custom_call.1} parent=15 // pred_region
          %s87 = sand.u32 %s23, 1
          %s88 = scalar_lea.sflag [#allocation3], %s87
          %s89 = sand.u32 %s23, 1
          %s90 = smul.addr %s89, 576
          %s91 = scalar_lea.vmem [#allocation2], %s90
          %s92 = smul.u32 24, %s13
          %94 = vsyncadd %s88, 0
          %s95 = smul.addr %s92, 3
          %s96 = smul.addr %s95, 8
          %s97 = scalar_lea.hbm %s0, %s96
          %s98 = sshll.u32 %s97, 4
          %s99 = int_to_ptr.hbm [resolvable:$true] %s98
          %s100 = sshll.u32 %s91, 4
          %s101 = int_to_ptr.vmem [resolvable:$true] %s100
          %106 = dma.hbm_to_vmem [thread:$0]  %s99, 9216, %s101, %s88, 384, 384, 24
        $region20: #{tpu_custom_call.1} parent=15 // pred_fallthru
          _
      $region16: #{tpu_custom_call.1} parent=5 // pred_fallthru
        _
      %p107 = scmp.le.s32.totalorder 1, %s13
      %p108 = scmp.lt.s32.totalorder %s13, 9
      %p109 = pnand %p107, %p108
      %p110 = pneg %p109
      // Predicated region
      $region21: #{tpu_custom_call.1} parent=5 // pred_check
        _
      $region22: #{tpu_custom_call.1} parent=5 // pred_check_branch
        %112 = sbr.rel (%p109) target = $region24
      $region23: #{tpu_custom_call.1} parent=5 // pred_region
        %s113 = ssub.s32 %s13, 1
        %s114 = sand.u32 %s26, 1
        %s115 = scalar_lea.sflag [#allocation3], %s114
        %s116 = sand.u32 %s26, 1
        %s117 = smul.addr %s116, 576
        %s118 = scalar_lea.vmem [#allocation2], %s117
        // Predicated region
        $region25: #{tpu_custom_call.1} parent=23 // pred_check
          %p119 = pneg %p39
        $region26: #{tpu_custom_call.1} parent=23 // pred_check_branch
          %121 = sbr.rel (%p119) target = $region28
        $region27: #{tpu_custom_call.1} parent=23 // pred_region
          %123 = dma.done %s115, 9216
        $region28: #{tpu_custom_call.1} parent=23 // pred_fallthru
          _
        %s124 = sand.u32 %s26, 1
        %s125 = scalar_lea.sflag [#allocation3], %s124
        %s126 = sand.u32 %s26, 1
        %s127 = smul.addr %s126, 576
        %s128 = scalar_lea.vmem [#allocation2], %s127
        %p129 = pneg %p39
        %p130 = pneg %p36
        %p131 = pneg %p65
        %p132 = pneg %p62
        %s133 = sand.u32 %s52, 1
        %s134 = scalar_lea.sflag [#allocation4], %s133
        %s135 = sand.u32 %s52, 1
        %s136 = smul.addr %s135, 576
        %s137 = scalar_lea.vmem [#allocation5], %s136
        %s138 = smul.u32 24, %s18
        %s139 = smul.u32 24, %s18
        %v140 = vld [vmem:[%s118] sm:$0xff]
        %v141 = vld [vmem:[%s118 + $0x8] sm:$0xff]
        %v142 = vld [vmem:[%s118 + $0x10] sm:$0xff]
        %v143 = vld [vmem:[%s118 + $0x18] sm:$0xff]
        %v144 = vld [vmem:[%s118 + $0x20] sm:$0xff]
        %v145 = vld [vmem:[%s118 + $0x28] sm:$0xff]
        %v146 = vld [vmem:[%s118 + $0x30] sm:$0xff]
        %v147 = vld [vmem:[%s118 + $0x38] sm:$0xff]
        %v148 = vld [vmem:[%s118 + $0x40] sm:$0xff]
        %v149 = vld [vmem:[%s118 + $0x48] sm:$0xff]
        %v150 = vld [vmem:[%s118 + $0x50] sm:$0xff]
        %v151 = vld [vmem:[%s118 + $0x58] sm:$0xff]
        %v152 = vld [vmem:[%s118 + $0x60] sm:$0xff]
        %v153 = vld [vmem:[%s118 + $0x68] sm:$0xff]
        %v154 = vld [vmem:[%s118 + $0x70] sm:$0xff]
        %v155 = vld [vmem:[%s118 + $0x78] sm:$0xff]
        %v156 = vld [vmem:[%s118 + $0x80] sm:$0xff]
        %v157 = vld [vmem:[%s118 + $0x88] sm:$0xff]
        %v158 = vld [vmem:[%s118 + $0x90] sm:$0xff]
        %v159 = vld [vmem:[%s118 + $0x98] sm:$0xff]
        %v160 = vld [vmem:[%s118 + $0xa0] sm:$0xff]
        %v161 = vld [vmem:[%s118 + $0xa8] sm:$0xff]
        %v162 = vld [vmem:[%s118 + $0xb0] sm:$0xff]
        %v163 = vld [vmem:[%s118 + $0xb8] sm:$0xff]
        %v164 = vld [vmem:[%s118 + $0xc0] sm:$0xff]
        %v165 = vld [vmem:[%s118 + $0xc8] sm:$0xff]
        %v166 = vld [vmem:[%s118 + $0xd0] sm:$0xff]
        %v167 = vld [vmem:[%s118 + $0xd8] sm:$0xff]
        %v168 = vld [vmem:[%s118 + $0xe0] sm:$0xff]
        %v169 = vld [vmem:[%s118 + $0xe8] sm:$0xff]
        %v170 = vld [vmem:[%s118 + $0xf0] sm:$0xff]
        %v171 = vld [vmem:[%s118 + $0xf8] sm:$0xff]
        %v172 = vld [vmem:[%s118 + $0x100] sm:$0xff]
        %v173 = vld [vmem:[%s118 + $0x108] sm:$0xff]
        %v174 = vld [vmem:[%s118 + $0x110] sm:$0xff]
        %v175 = vld [vmem:[%s118 + $0x118] sm:$0xff]
        %v176 = vld [vmem:[%s118 + $0x120] sm:$0xff]
        %v177 = vld [vmem:[%s118 + $0x128] sm:$0xff]
        %v178 = vld [vmem:[%s118 + $0x130] sm:$0xff]
        %v179 = vld [vmem:[%s118 + $0x138] sm:$0xff]
        %v180 = vld [vmem:[%s118 + $0x140] sm:$0xff]
        %v181 = vld [vmem:[%s118 + $0x148] sm:$0xff]
        %v182 = vld [vmem:[%s118 + $0x150] sm:$0xff]
        %v183 = vld [vmem:[%s118 + $0x158] sm:$0xff]
        %v184 = vld [vmem:[%s118 + $0x160] sm:$0xff]
        %v185 = vld [vmem:[%s118 + $0x168] sm:$0xff]
        %v186 = vld [vmem:[%s118 + $0x170] sm:$0xff]
        %v187 = vld [vmem:[%s118 + $0x178] sm:$0xff]
        %v188 = vld [vmem:[%s118 + $0x180] sm:$0xff]
        %v189 = vld [vmem:[%s118 + $0x188] sm:$0xff]
        %v190 = vld [vmem:[%s118 + $0x190] sm:$0xff]
        %v191 = vld [vmem:[%s118 + $0x198] sm:$0xff]
        %v192 = vld [vmem:[%s118 + $0x1a0] sm:$0xff]
        %v193 = vld [vmem:[%s118 + $0x1a8] sm:$0xff]
        %v194 = vld [vmem:[%s118 + $0x1b0] sm:$0xff]
        %v195 = vld [vmem:[%s118 + $0x1b8] sm:$0xff]
        %v196 = vld [vmem:[%s118 + $0x1c0] sm:$0xff]
        %v197 = vld [vmem:[%s118 + $0x1c8] sm:$0xff]
        %v198 = vld [vmem:[%s118 + $0x1d0] sm:$0xff]
        %v199 = vld [vmem:[%s118 + $0x1d8] sm:$0xff]
        %v200 = vld [vmem:[%s118 + $0x1e0] sm:$0xff]
        %v201 = vld [vmem:[%s118 + $0x1e8] sm:$0xff]
        %v202 = vld [vmem:[%s118 + $0x1f0] sm:$0xff]
        %v203 = vld [vmem:[%s118 + $0x1f8] sm:$0xff]
        %v204 = vld [vmem:[%s118 + $0x200] sm:$0xff]
        %v205 = vld [vmem:[%s118 + $0x208] sm:$0xff]
        %v206 = vld [vmem:[%s118 + $0x210] sm:$0xff]
        %v207 = vld [vmem:[%s118 + $0x218] sm:$0xff]
        %v208 = vld [vmem:[%s118 + $0x220] sm:$0xff]
        %v209 = vld [vmem:[%s118 + $0x228] sm:$0xff]
        %v210 = vld [vmem:[%s118 + $0x230] sm:$0xff]
        %v211 = vld [vmem:[%s118 + $0x238] sm:$0xff]
        %v212 = vmax.f32 %v140, %v141
        %v213 = vmax.f32 %v212, %v142
        %214 = vmax.xlane.f32.xlu0 %v213
        %v215 = vpop.xlane.xlu0 %214
        %v216 = vmax.f32 %v143, %v144
        %v217 = vmax.f32 %v216, %v145
        %218 = vmax.xlane.f32.xlu0 %v217
        %v219 = vpop.xlane.xlu0 %218
        %v220 = vmax.f32 %v146, %v147
        %v221 = vmax.f32 %v220, %v148
        %222 = vmax.xlane.f32.xlu0 %v221
        %v223 = vpop.xlane.xlu0 %222
        %v224 = vmax.f32 %v149, %v150
        %v225 = vmax.f32 %v224, %v151
        %226 = vmax.xlane.f32.xlu0 %v225
        %v227 = vpop.xlane.xlu0 %226
        %v228 = vmax.f32 %v152, %v153
        %v229 = vmax.f32 %v228, %v154
        %230 = vmax.xlane.f32.xlu0 %v229
        %v231 = vpop.xlane.xlu0 %230
        %v232 = vmax.f32 %v155, %v156
        %v233 = vmax.f32 %v232, %v157
        %234 = vmax.xlane.f32.xlu0 %v233
        %v235 = vpop.xlane.xlu0 %234
        %v236 = vmax.f32 %v158, %v159
        %v237 = vmax.f32 %v236, %v160
        %238 = vmax.xlane.f32.xlu0 %v237
        %v239 = vpop.xlane.xlu0 %238
        %v240 = vmax.f32 %v161, %v162
        %v241 = vmax.f32 %v240, %v163
        %242 = vmax.xlane.f32.xlu0 %v241
        %v243 = vpop.xlane.xlu0 %242
        %v244 = vmax.f32 %v164, %v165
        %v245 = vmax.f32 %v244, %v166
        %246 = vmax.xlane.f32.xlu0 %v245
        %v247 = vpop.xlane.xlu0 %246
        %v248 = vmax.f32 %v167, %v168
        %v249 = vmax.f32 %v248, %v169
        %250 = vmax.xlane.f32.xlu0 %v249
        %v251 = vpop.xlane.xlu0 %250
        %v252 = vmax.f32 %v170, %v171
        %v253 = vmax.f32 %v252, %v172
        %254 = vmax.xlane.f32.xlu0 %v253
        %v255 = vpop.xlane.xlu0 %254
        %v256 = vmax.f32 %v173, %v174
        %v257 = vmax.f32 %v256, %v175
        %258 = vmax.xlane.f32.xlu0 %v257
        %v259 = vpop.xlane.xlu0 %258
        %v260 = vmax.f32 %v176, %v177
        %v261 = vmax.f32 %v260, %v178
        %262 = vmax.xlane.f32.xlu0 %v261
        %v263 = vpop.xlane.xlu0 %262
        %v264 = vmax.f32 %v179, %v180
        %v265 = vmax.f32 %v264, %v181
        %266 = vmax.xlane.f32.xlu0 %v265
        %v267 = vpop.xlane.xlu0 %266
        %v268 = vmax.f32 %v182, %v183
        %v269 = vmax.f32 %v268, %v184
        %270 = vmax.xlane.f32.xlu0 %v269
        %v271 = vpop.xlane.xlu0 %270
        %v272 = vmax.f32 %v185, %v186
        %v273 = vmax.f32 %v272, %v187
        %274 = vmax.xlane.f32.xlu0 %v273
        %v275 = vpop.xlane.xlu0 %274
        %v276 = vmax.f32 %v188, %v189
        %v277 = vmax.f32 %v276, %v190
        %278 = vmax.xlane.f32.xlu0 %v277
        %v279 = vpop.xlane.xlu0 %278
        %v280 = vmax.f32 %v191, %v192
        %v281 = vmax.f32 %v280, %v193
        %282 = vmax.xlane.f32.xlu0 %v281
        %v283 = vpop.xlane.xlu0 %282
        %v284 = vmax.f32 %v194, %v195
        %v285 = vmax.f32 %v284, %v196
        %286 = vmax.xlane.f32.xlu0 %v285
        %v287 = vpop.xlane.xlu0 %286
        %v288 = vmax.f32 %v197, %v198
        %v289 = vmax.f32 %v288, %v199
        %290 = vmax.xlane.f32.xlu0 %v289
        %v291 = vpop.xlane.xlu0 %290
        %v292 = vmax.f32 %v200, %v201
        %v293 = vmax.f32 %v292, %v202
        %294 = vmax.xlane.f32.xlu0 %v293
        %v295 = vpop.xlane.xlu0 %294
        %v296 = vmax.f32 %v203, %v204
        %v297 = vmax.f32 %v296, %v205
        %298 = vmax.xlane.f32.xlu0 %v297
        %v299 = vpop.xlane.xlu0 %298
        %v300 = vmax.f32 %v206, %v207
        %v301 = vmax.f32 %v300, %v208
        %302 = vmax.xlane.f32.xlu0 %v301
        %v303 = vpop.xlane.xlu0 %302
        %v304 = vmax.f32 %v209, %v210
        %v305 = vmax.f32 %v304, %v211
        %306 = vmax.xlane.f32.xlu0 %v305
        %v307 = vpop.xlane.xlu0 %306
        %v308 = vsub.f32 %v140, %v215
        %v309 = vsub.f32 %v141, %v215
        %v310 = vsub.f32 %v142, %v215
        %v311 = vsub.f32 %v143, %v219
        %v312 = vsub.f32 %v144, %v219
        %v313 = vsub.f32 %v145, %v219
        %v314 = vsub.f32 %v146, %v223
        %v315 = vsub.f32 %v147, %v223
        %v316 = vsub.f32 %v148, %v223
        %v317 = vsub.f32 %v149, %v227
        %v318 = vsub.f32 %v150, %v227
        %v319 = vsub.f32 %v151, %v227
        %v320 = vsub.f32 %v152, %v231
        %v321 = vsub.f32 %v153, %v231
        %v322 = vsub.f32 %v154, %v231
        %v323 = vsub.f32 %v155, %v235
        %v324 = vsub.f32 %v156, %v235
        %v325 = vsub.f32 %v157, %v235
        %v326 = vsub.f32 %v158, %v239
        %v327 = vsub.f32 %v159, %v239
        %v328 = vsub.f32 %v160, %v239
        %v329 = vsub.f32 %v161, %v243
        %v330 = vsub.f32 %v162, %v243
        %v331 = vsub.f32 %v163, %v243
        %v332 = vsub.f32 %v164, %v247
        %v333 = vsub.f32 %v165, %v247
        %v334 = vsub.f32 %v166, %v247
        %v335 = vsub.f32 %v167, %v251
        %v336 = vsub.f32 %v168, %v251
        %v337 = vsub.f32 %v169, %v251
        %v338 = vsub.f32 %v170, %v255
        %v339 = vsub.f32 %v171, %v255
        %v340 = vsub.f32 %v172, %v255
        %v341 = vsub.f32 %v173, %v259
        %v342 = vsub.f32 %v174, %v259
        %v343 = vsub.f32 %v175, %v259
        %v344 = vsub.f32 %v176, %v263
        %v345 = vsub.f32 %v177, %v263
        %v346 = vsub.f32 %v178, %v263
        %v347 = vsub.f32 %v179, %v267
        %v348 = vsub.f32 %v180, %v267
        %v349 = vsub.f32 %v181, %v267
        %v350 = vsub.f32 %v182, %v271
        %v351 = vsub.f32 %v183, %v271
        %v352 = vsub.f32 %v184, %v271
        %v353 = vsub.f32 %v185, %v275
        %v354 = vsub.f32 %v186, %v275
        %v355 = vsub.f32 %v187, %v275
        %v356 = vsub.f32 %v188, %v279
        %v357 = vsub.f32 %v189, %v279
        %v358 = vsub.f32 %v190, %v279
        %v359 = vsub.f32 %v191, %v283
        %v360 = vsub.f32 %v192, %v283
        %v361 = vsub.f32 %v193, %v283
        %v362 = vsub.f32 %v194, %v287
        %v363 = vsub.f32 %v195, %v287
        %v364 = vsub.f32 %v196, %v287
        %v365 = vsub.f32 %v197, %v291
        %v366 = vsub.f32 %v198, %v291
        %v367 = vsub.f32 %v199, %v291
        %v368 = vsub.f32 %v200, %v295
        %v369 = vsub.f32 %v201, %v295
        %v370 = vsub.f32 %v202, %v295
        %v371 = vsub.f32 %v203, %v299
        %v372 = vsub.f32 %v204, %v299
        %v373 = vsub.f32 %v205, %v299
        %v374 = vsub.f32 %v206, %v303
        %v375 = vsub.f32 %v207, %v303
        %v376 = vsub.f32 %v208, %v303
        %v377 = vsub.f32 %v209, %v307
        %v378 = vsub.f32 %v210, %v307
        %v379 = vsub.f32 %v211, %v307
        %v380 = vmul.f32 %v308, 1.442695
        %v381 = vpow.pop %v380
        %v382 = vmul.f32 %v309, 1.442695
        %v383 = vpow.pop %v382
        %v384 = vmul.f32 %v310, 1.442695
        %v385 = vpow.pop %v384
        %v386 = vmul.f32 %v311, 1.442695
        %v387 = vpow.pop %v386
        %v388 = vmul.f32 %v312, 1.442695
        %v389 = vpow.pop %v388
        %v390 = vmul.f32 %v313, 1.442695
        %v391 = vpow.pop %v390
        %v392 = vmul.f32 %v314, 1.442695
        %v393 = vpow.pop %v392
        %v394 = vmul.f32 %v315, 1.442695
        %v395 = vpow.pop %v394
        %v396 = vmul.f32 %v316, 1.442695
        %v397 = vpow.pop %v396
        %v398 = vmul.f32 %v317, 1.442695
        %v399 = vpow.pop %v398
        %v400 = vmul.f32 %v318, 1.442695
        %v401 = vpow.pop %v400
        %v402 = vmul.f32 %v319, 1.442695
        %v403 = vpow.pop %v402
        %v404 = vmul.f32 %v320, 1.442695
        %v405 = vpow.pop %v404
        %v406 = vmul.f32 %v321, 1.442695
        %v407 = vpow.pop %v406
        %v408 = vmul.f32 %v322, 1.442695
        %v409 = vpow.pop %v408
        %v410 = vmul.f32 %v323, 1.442695
        %v411 = vpow.pop %v410
        %v412 = vmul.f32 %v324, 1.442695
        %v413 = vpow.pop %v412
        %v414 = vmul.f32 %v325, 1.442695
        %v415 = vpow.pop %v414
        %v416 = vmul.f32 %v326, 1.442695
        %v417 = vpow.pop %v416
        %v418 = vmul.f32 %v327, 1.442695
        %v419 = vpow.pop %v418
        %v420 = vmul.f32 %v328, 1.442695
        %v421 = vpow.pop %v420
        %v422 = vmul.f32 %v329, 1.442695
        %v423 = vpow.pop %v422
        %v424 = vmul.f32 %v330, 1.442695
        %v425 = vpow.pop %v424
        %v426 = vmul.f32 %v331, 1.442695
        %v427 = vpow.pop %v426
        %v428 = vmul.f32 %v332, 1.442695
        %v429 = vpow.pop %v428
        %v430 = vmul.f32 %v333, 1.442695
        %v431 = vpow.pop %v430
        %v432 = vmul.f32 %v334, 1.442695
        %v433 = vpow.pop %v432
        %v434 = vmul.f32 %v335, 1.442695
        %v435 = vpow.pop %v434
        %v436 = vmul.f32 %v336, 1.442695
        %v437 = vpow.pop %v436
        %v438 = vmul.f32 %v337, 1.442695
        %v439 = vpow.pop %v438
        %v440 = vmul.f32 %v338, 1.442695
        %v441 = vpow.pop %v440
        %v442 = vmul.f32 %v339, 1.442695
        %v443 = vpow.pop %v442
        %v444 = vmul.f32 %v340, 1.442695
        %v445 = vpow.pop %v444
        %v446 = vmul.f32 %v341, 1.442695
        %v447 = vpow.pop %v446
        %v448 = vmul.f32 %v342, 1.442695
        %v449 = vpow.pop %v448
        %v450 = vmul.f32 %v343, 1.442695
        %v451 = vpow.pop %v450
        %v452 = vmul.f32 %v344, 1.442695
        %v453 = vpow.pop %v452
        %v454 = vmul.f32 %v345, 1.442695
        %v455 = vpow.pop %v454
        %v456 = vmul.f32 %v346, 1.442695
        %v457 = vpow.pop %v456
        %v458 = vmul.f32 %v347, 1.442695
        %v459 = vpow.pop %v458
        %v460 = vmul.f32 %v348, 1.442695
        %v461 = vpow.pop %v460
        %v462 = vmul.f32 %v349, 1.442695
        %v463 = vpow.pop %v462
        %v464 = vmul.f32 %v350, 1.442695
        %v465 = vpow.pop %v464
        %v466 = vmul.f32 %v351, 1.442695
        %v467 = vpow.pop %v466
        %v468 = vmul.f32 %v352, 1.442695
        %v469 = vpow.pop %v468
        %v470 = vmul.f32 %v353, 1.442695
        %v471 = vpow.pop %v470
        %v472 = vmul.f32 %v354, 1.442695
        %v473 = vpow.pop %v472
        %v474 = vmul.f32 %v355, 1.442695
        %v475 = vpow.pop %v474
        %v476 = vmul.f32 %v356, 1.442695
        %v477 = vpow.pop %v476
        %v478 = vmul.f32 %v357, 1.442695
        %v479 = vpow.pop %v478
        %v480 = vmul.f32 %v358, 1.442695
        %v481 = vpow.pop %v480
        %v482 = vmul.f32 %v359, 1.442695
        %v483 = vpow.pop %v482
        %v484 = vmul.f32 %v360, 1.442695
        %v485 = vpow.pop %v484
        %v486 = vmul.f32 %v361, 1.442695
        %v487 = vpow.pop %v486
        %v488 = vmul.f32 %v362, 1.442695
        %v489 = vpow.pop %v488
        %v490 = vmul.f32 %v363, 1.442695
        %v491 = vpow.pop %v490
        %v492 = vmul.f32 %v364, 1.442695
        %v493 = vpow.pop %v492
        %v494 = vmul.f32 %v365, 1.442695
        %v495 = vpow.pop %v494
        %v496 = vmul.f32 %v366, 1.442695
        %v497 = vpow.pop %v496
        %v498 = vmul.f32 %v367, 1.442695
        %v499 = vpow.pop %v498
        %v500 = vmul.f32 %v368, 1.442695
        %v501 = vpow.pop %v500
        %v502 = vmul.f32 %v369, 1.442695
        %v503 = vpow.pop %v502
        %v504 = vmul.f32 %v370, 1.442695
        %v505 = vpow.pop %v504
        %v506 = vmul.f32 %v371, 1.442695
        %v507 = vpow.pop %v506
        %v508 = vmul.f32 %v372, 1.442695
        %v509 = vpow.pop %v508
        %v510 = vmul.f32 %v373, 1.442695
        %v511 = vpow.pop %v510
        %v512 = vmul.f32 %v374, 1.442695
        %v513 = vpow.pop %v512
        %v514 = vmul.f32 %v375, 1.442695
        %v515 = vpow.pop %v514
        %v516 = vmul.f32 %v376, 1.442695
        %v517 = vpow.pop %v516
        %v518 = vmul.f32 %v377, 1.442695
        %v519 = vpow.pop %v518
        %v520 = vmul.f32 %v378, 1.442695
        %v521 = vpow.pop %v520
        %v522 = vmul.f32 %v379, 1.442695
        %v523 = vpow.pop %v522
        %v524 = vadd.f32 %v381, %v383
        %v525 = vadd.f32 %v524, %v385
        %526 = vadd.xlane.f32.xlu0 %v525
        %v527 = vpop.xlane.xlu0 %526
        %v528 = vadd.f32 %v387, %v389
        %v529 = vadd.f32 %v528, %v391
        %530 = vadd.xlane.f32.xlu0 %v529
        %v531 = vpop.xlane.xlu0 %530
        %v532 = vadd.f32 %v393, %v395
        %v533 = vadd.f32 %v532, %v397
        %534 = vadd.xlane.f32.xlu0 %v533
        %v535 = vpop.xlane.xlu0 %534
        %v536 = vadd.f32 %v399, %v401
        %v537 = vadd.f32 %v536, %v403
        %538 = vadd.xlane.f32.xlu0 %v537
        %v539 = vpop.xlane.xlu0 %538
        %v540 = vadd.f32 %v405, %v407
        %v541 = vadd.f32 %v540, %v409
        %542 = vadd.xlane.f32.xlu0 %v541
        %v543 = vpop.xlane.xlu0 %542
        %v544 = vadd.f32 %v411, %v413
        %v545 = vadd.f32 %v544, %v415
        %546 = vadd.xlane.f32.xlu0 %v545
        %v547 = vpop.xlane.xlu0 %546
        %v548 = vadd.f32 %v417, %v419
        %v549 = vadd.f32 %v548, %v421
        %550 = vadd.xlane.f32.xlu0 %v549
        %v551 = vpop.xlane.xlu0 %550
        %v552 = vadd.f32 %v423, %v425
        %v553 = vadd.f32 %v552, %v427
        %554 = vadd.xlane.f32.xlu0 %v553
        %v555 = vpop.xlane.xlu0 %554
        %v556 = vadd.f32 %v429, %v431
        %v557 = vadd.f32 %v556, %v433
        %558 = vadd.xlane.f32.xlu0 %v557
        %v559 = vpop.xlane.xlu0 %558
        %v560 = vadd.f32 %v435, %v437
        %v561 = vadd.f32 %v560, %v439
        %562 = vadd.xlane.f32.xlu0 %v561
        %v563 = vpop.xlane.xlu0 %562
        %v564 = vadd.f32 %v441, %v443
        %v565 = vadd.f32 %v564, %v445
        %566 = vadd.xlane.f32.xlu0 %v565
        %v567 = vpop.xlane.xlu0 %566
        %v568 = vadd.f32 %v447, %v449
        %v569 = vadd.f32 %v568, %v451
        %570 = vadd.xlane.f32.xlu0 %v569
        %v571 = vpop.xlane.xlu0 %570
        %v572 = vadd.f32 %v453, %v455
        %v573 = vadd.f32 %v572, %v457
        %574 = vadd.xlane.f32.xlu0 %v573
        %v575 = vpop.xlane.xlu0 %574
        %v576 = vadd.f32 %v459, %v461
        %v577 = vadd.f32 %v576, %v463
        %578 = vadd.xlane.f32.xlu0 %v577
        %v579 = vpop.xlane.xlu0 %578
        %v580 = vadd.f32 %v465, %v467
        %v581 = vadd.f32 %v580, %v469
        %582 = vadd.xlane.f32.xlu0 %v581
        %v583 = vpop.xlane.xlu0 %582
        %v584 = vadd.f32 %v471, %v473
        %v585 = vadd.f32 %v584, %v475
        %586 = vadd.xlane.f32.xlu0 %v585
        %v587 = vpop.xlane.xlu0 %586
        %v588 = vadd.f32 %v477, %v479
        %v589 = vadd.f32 %v588, %v481
        %590 = vadd.xlane.f32.xlu0 %v589
        %v591 = vpop.xlane.xlu0 %590
        %v592 = vadd.f32 %v483, %v485
        %v593 = vadd.f32 %v592, %v487
        %594 = vadd.xlane.f32.xlu0 %v593
        %v595 = vpop.xlane.xlu0 %594
        %v596 = vadd.f32 %v489, %v491
        %v597 = vadd.f32 %v596, %v493
        %598 = vadd.xlane.f32.xlu0 %v597
        %v599 = vpop.xlane.xlu0 %598
        %v600 = vadd.f32 %v495, %v497
        %v601 = vadd.f32 %v600, %v499
        %602 = vadd.xlane.f32.xlu0 %v601
        %v603 = vpop.xlane.xlu0 %602
        %v604 = vadd.f32 %v501, %v503
        %v605 = vadd.f32 %v604, %v505
        %606 = vadd.xlane.f32.xlu0 %v605
        %v607 = vpop.xlane.xlu0 %606
        %v608 = vadd.f32 %v507, %v509
        %v609 = vadd.f32 %v608, %v511
        %610 = vadd.xlane.f32.xlu0 %v609
        %v611 = vpop.xlane.xlu0 %610
        %v612 = vadd.f32 %v513, %v515
        %v613 = vadd.f32 %v612, %v517
        %614 = vadd.xlane.f32.xlu0 %v613
        %v615 = vpop.xlane.xlu0 %614
        %v616 = vadd.f32 %v519, %v521
        %v617 = vadd.f32 %v616, %v523
        %618 = vadd.xlane.f32.xlu0 %v617
        %v619 = vpop.xlane.xlu0 %618
        %v620 = vrcp.pop %v527
        %v621 = vmul.f32 %v527, %v620
        %v622 = vsub.f32 1.0, %v621
        %v623 = vmul.f32 %v620, %v622
        %v624 = vadd.f32 %v620, %v623
        %vm625 = vweird.f32 %v527
        %vm626 = vweird.f32 %v620
        %vm627 = vmor %vm625, %vm626
        %v628 = vsel %vm627, %v620, %v624
        %v629 = vand.u32 2147483647, %v527
        %vm630 = vcmp.eq.f32.partialorder %v629, 8.507059e+37
        %v631 = vand.u32 %v527, 2147483648
        %v632 = vor.u32 1.1754944e-38, %v631
        %v633 = vsel %vm630, %v632, %v628
        %v634 = vmul.f32 %v381, %v633
        %v635 = vmul.f32 %v383, %v633
        %v636 = vmul.f32 %v385, %v633
        %v637 = vrcp.pop %v531
        %v638 = vmul.f32 %v531, %v637
        %v639 = vsub.f32 1.0, %v638
        %v640 = vmul.f32 %v637, %v639
        %v641 = vadd.f32 %v637, %v640
        %vm642 = vweird.f32 %v531
        %vm643 = vweird.f32 %v637
        %vm644 = vmor %vm642, %vm643
        %v645 = vsel %vm644, %v637, %v641
        %v646 = vand.u32 2147483647, %v531
        %vm647 = vcmp.eq.f32.partialorder %v646, 8.507059e+37
        %v648 = vand.u32 %v531, 2147483648
        %v649 = vor.u32 1.1754944e-38, %v648
        %v650 = vsel %vm647, %v649, %v645
        %v651 = vmul.f32 %v387, %v650
        %v652 = vmul.f32 %v389, %v650
        %v653 = vmul.f32 %v391, %v650
        %v654 = vrcp.pop %v535
        %v655 = vmul.f32 %v535, %v654
        %v656 = vsub.f32 1.0, %v655
        %v657 = vmul.f32 %v654, %v656
        %v658 = vadd.f32 %v654, %v657
        %vm659 = vweird.f32 %v535
        %vm660 = vweird.f32 %v654
        %vm661 = vmor %vm659, %vm660
        %v662 = vsel %vm661, %v654, %v658
        %v663 = vand.u32 2147483647, %v535
        %vm664 = vcmp.eq.f32.partialorder %v663, 8.507059e+37
        %v665 = vand.u32 %v535, 2147483648
        %v666 = vor.u32 1.1754944e-38, %v665
        %v667 = vsel %vm664, %v666, %v662
        %v668 = vmul.f32 %v393, %v667
        %v669 = vmul.f32 %v395, %v667
        %v670 = vmul.f32 %v397, %v667
        %v671 = vrcp.pop %v539
        %v672 = vmul.f32 %v539, %v671
        %v673 = vsub.f32 1.0, %v672
        %v674 = vmul.f32 %v671, %v673
        %v675 = vadd.f32 %v671, %v674
        %vm676 = vweird.f32 %v539
        %vm677 = vweird.f32 %v671
        %vm678 = vmor %vm676, %vm677
        %v679 = vsel %vm678, %v671, %v675
        %v680 = vand.u32 2147483647, %v539
        %vm681 = vcmp.eq.f32.partialorder %v680, 8.507059e+37
        %v682 = vand.u32 %v539, 2147483648
        %v683 = vor.u32 1.1754944e-38, %v682
        %v684 = vsel %vm681, %v683, %v679
        %v685 = vmul.f32 %v399, %v684
        %v686 = vmul.f32 %v401, %v684
        %v687 = vmul.f32 %v403, %v684
        %v688 = vrcp.pop %v543
        %v689 = vmul.f32 %v543, %v688
        %v690 = vsub.f32 1.0, %v689
        %v691 = vmul.f32 %v688, %v690
        %v692 = vadd.f32 %v688, %v691
        %vm693 = vweird.f32 %v543
        %vm694 = vweird.f32 %v688
        %vm695 = vmor %vm693, %vm694
        %v696 = vsel %vm695, %v688, %v692
        %v697 = vand.u32 2147483647, %v543
        %vm698 = vcmp.eq.f32.partialorder %v697, 8.507059e+37
        %v699 = vand.u32 %v543, 2147483648
        %v700 = vor.u32 1.1754944e-38, %v699
        %v701 = vsel %vm698, %v700, %v696
        %v702 = vmul.f32 %v405, %v701
        %v703 = vmul.f32 %v407, %v701
        %v704 = vmul.f32 %v409, %v701
        %v705 = vrcp.pop %v547
        %v706 = vmul.f32 %v547, %v705
        %v707 = vsub.f32 1.0, %v706
        %v708 = vmul.f32 %v705, %v707
        %v709 = vadd.f32 %v705, %v708
        %vm710 = vweird.f32 %v547
        %vm711 = vweird.f32 %v705
        %vm712 = vmor %vm710, %vm711
        %v713 = vsel %vm712, %v705, %v709
        %v714 = vand.u32 2147483647, %v547
        %vm715 = vcmp.eq.f32.partialorder %v714, 8.507059e+37
        %v716 = vand.u32 %v547, 2147483648
        %v717 = vor.u32 1.1754944e-38, %v716
        %v718 = vsel %vm715, %v717, %v713
        %v719 = vmul.f32 %v411, %v718
        %v720 = vmul.f32 %v413, %v718
        %v721 = vmul.f32 %v415, %v718
        %v722 = vrcp.pop %v551
        %v723 = vmul.f32 %v551, %v722
        %v724 = vsub.f32 1.0, %v723
        %v725 = vmul.f32 %v722, %v724
        %v726 = vadd.f32 %v722, %v725
        %vm727 = vweird.f32 %v551
        %vm728 = vweird.f32 %v722
        %vm729 = vmor %vm727, %vm728
        %v730 = vsel %vm729, %v722, %v726
        %v731 = vand.u32 2147483647, %v551
        %vm732 = vcmp.eq.f32.partialorder %v731, 8.507059e+37
        %v733 = vand.u32 %v551, 2147483648
        %v734 = vor.u32 1.1754944e-38, %v733
        %v735 = vsel %vm732, %v734, %v730
        %v736 = vmul.f32 %v417, %v735
        %v737 = vmul.f32 %v419, %v735
        %v738 = vmul.f32 %v421, %v735
        %v739 = vrcp.pop %v555
        %v740 = vmul.f32 %v555, %v739
        %v741 = vsub.f32 1.0, %v740
        %v742 = vmul.f32 %v739, %v741
        %v743 = vadd.f32 %v739, %v742
        %vm744 = vweird.f32 %v555
        %vm745 = vweird.f32 %v739
        %vm746 = vmor %vm744, %vm745
        %v747 = vsel %vm746, %v739, %v743
        %v748 = vand.u32 2147483647, %v555
        %vm749 = vcmp.eq.f32.partialorder %v748, 8.507059e+37
        %v750 = vand.u32 %v555, 2147483648
        %v751 = vor.u32 1.1754944e-38, %v750
        %v752 = vsel %vm749, %v751, %v747
        %v753 = vmul.f32 %v423, %v752
        %v754 = vmul.f32 %v425, %v752
        %v755 = vmul.f32 %v427, %v752
        %v756 = vrcp.pop %v559
        %v757 = vmul.f32 %v559, %v756
        %v758 = vsub.f32 1.0, %v757
        %v759 = vmul.f32 %v756, %v758
        %v760 = vadd.f32 %v756, %v759
        %vm761 = vweird.f32 %v559
        %vm762 = vweird.f32 %v756
        %vm763 = vmor %vm761, %vm762
        %v764 = vsel %vm763, %v756, %v760
        %v765 = vand.u32 2147483647, %v559
        %vm766 = vcmp.eq.f32.partialorder %v765, 8.507059e+37
        %v767 = vand.u32 %v559, 2147483648
        %v768 = vor.u32 1.1754944e-38, %v767
        %v769 = vsel %vm766, %v768, %v764
        %v770 = vmul.f32 %v429, %v769
        %v771 = vmul.f32 %v431, %v769
        %v772 = vmul.f32 %v433, %v769
        %v773 = vrcp.pop %v563
        %v774 = vmul.f32 %v563, %v773
        %v775 = vsub.f32 1.0, %v774
        %v776 = vmul.f32 %v773, %v775
        %v777 = vadd.f32 %v773, %v776
        %vm778 = vweird.f32 %v563
        %vm779 = vweird.f32 %v773
        %vm780 = vmor %vm778, %vm779
        %v781 = vsel %vm780, %v773, %v777
        %v782 = vand.u32 2147483647, %v563
        %vm783 = vcmp.eq.f32.partialorder %v782, 8.507059e+37
        %v784 = vand.u32 %v563, 2147483648
        %v785 = vor.u32 1.1754944e-38, %v784
        %v786 = vsel %vm783, %v785, %v781
        %v787 = vmul.f32 %v435, %v786
        %v788 = vmul.f32 %v437, %v786
        %v789 = vmul.f32 %v439, %v786
        %v790 = vrcp.pop %v567
        %v791 = vmul.f32 %v567, %v790
        %v792 = vsub.f32 1.0, %v791
        %v793 = vmul.f32 %v790, %v792
        %v794 = vadd.f32 %v790, %v793
        %vm795 = vweird.f32 %v567
        %vm796 = vweird.f32 %v790
        %vm797 = vmor %vm795, %vm796
        %v798 = vsel %vm797, %v790, %v794
        %v799 = vand.u32 2147483647, %v567
        %vm800 = vcmp.eq.f32.partialorder %v799, 8.507059e+37
        %v801 = vand.u32 %v567, 2147483648
        %v802 = vor.u32 1.1754944e-38, %v801
        %v803 = vsel %vm800, %v802, %v798
        %v804 = vmul.f32 %v441, %v803
        %v805 = vmul.f32 %v443, %v803
        %v806 = vmul.f32 %v445, %v803
        %v807 = vrcp.pop %v571
        %v808 = vmul.f32 %v571, %v807
        %v809 = vsub.f32 1.0, %v808
        %v810 = vmul.f32 %v807, %v809
        %v811 = vadd.f32 %v807, %v810
        %vm812 = vweird.f32 %v571
        %vm813 = vweird.f32 %v807
        %vm814 = vmor %vm812, %vm813
        %v815 = vsel %vm814, %v807, %v811
        %v816 = vand.u32 2147483647, %v571
        %vm817 = vcmp.eq.f32.partialorder %v816, 8.507059e+37
        %v818 = vand.u32 %v571, 2147483648
        %v819 = vor.u32 1.1754944e-38, %v818
        %v820 = vsel %vm817, %v819, %v815
        %v821 = vmul.f32 %v447, %v820
        %v822 = vmul.f32 %v449, %v820
        %v823 = vmul.f32 %v451, %v820
        %v824 = vrcp.pop %v575
        %v825 = vmul.f32 %v575, %v824
        %v826 = vsub.f32 1.0, %v825
        %v827 = vmul.f32 %v824, %v826
        %v828 = vadd.f32 %v824, %v827
        %vm829 = vweird.f32 %v575
        %vm830 = vweird.f32 %v824
        %vm831 = vmor %vm829, %vm830
        %v832 = vsel %vm831, %v824, %v828
        %v833 = vand.u32 2147483647, %v575
        %vm834 = vcmp.eq.f32.partialorder %v833, 8.507059e+37
        %v835 = vand.u32 %v575, 2147483648
        %v836 = vor.u32 1.1754944e-38, %v835
        %v837 = vsel %vm834, %v836, %v832
        %v838 = vmul.f32 %v453, %v837
        %v839 = vmul.f32 %v455, %v837
        %v840 = vmul.f32 %v457, %v837
        %v841 = vrcp.pop %v579
        %v842 = vmul.f32 %v579, %v841
        %v843 = vsub.f32 1.0, %v842
        %v844 = vmul.f32 %v841, %v843
        %v845 = vadd.f32 %v841, %v844
        %vm846 = vweird.f32 %v579
        %vm847 = vweird.f32 %v841
        %vm848 = vmor %vm846, %vm847
        %v849 = vsel %vm848, %v841, %v845
        %v850 = vand.u32 2147483647, %v579
        %vm851 = vcmp.eq.f32.partialorder %v850, 8.507059e+37
        %v852 = vand.u32 %v579, 2147483648
        %v853 = vor.u32 1.1754944e-38, %v852
        %v854 = vsel %vm851, %v853, %v849
        %v855 = vmul.f32 %v459, %v854
        %v856 = vmul.f32 %v461, %v854
        %v857 = vmul.f32 %v463, %v854
        %v858 = vrcp.pop %v583
        %v859 = vmul.f32 %v583, %v858
        %v860 = vsub.f32 1.0, %v859
        %v861 = vmul.f32 %v858, %v860
        %v862 = vadd.f32 %v858, %v861
        %vm863 = vweird.f32 %v583
        %vm864 = vweird.f32 %v858
        %vm865 = vmor %vm863, %vm864
        %v866 = vsel %vm865, %v858, %v862
        %v867 = vand.u32 2147483647, %v583
        %vm868 = vcmp.eq.f32.partialorder %v867, 8.507059e+37
        %v869 = vand.u32 %v583, 2147483648
        %v870 = vor.u32 1.1754944e-38, %v869
        %v871 = vsel %vm868, %v870, %v866
        %v872 = vmul.f32 %v465, %v871
        %v873 = vmul.f32 %v467, %v871
        %v874 = vmul.f32 %v469, %v871
        %v875 = vrcp.pop %v587
        %v876 = vmul.f32 %v587, %v875
        %v877 = vsub.f32 1.0, %v876
        %v878 = vmul.f32 %v875, %v877
        %v879 = vadd.f32 %v875, %v878
        %vm880 = vweird.f32 %v587
        %vm881 = vweird.f32 %v875
        %vm882 = vmor %vm880, %vm881
        %v883 = vsel %vm882, %v875, %v879
        %v884 = vand.u32 2147483647, %v587
        %vm885 = vcmp.eq.f32.partialorder %v884, 8.507059e+37
        %v886 = vand.u32 %v587, 2147483648
        %v887 = vor.u32 1.1754944e-38, %v886
        %v888 = vsel %vm885, %v887, %v883
        %v889 = vmul.f32 %v471, %v888
        %v890 = vmul.f32 %v473, %v888
        %v891 = vmul.f32 %v475, %v888
        %v892 = vrcp.pop %v591
        %v893 = vmul.f32 %v591, %v892
        %v894 = vsub.f32 1.0, %v893
        %v895 = vmul.f32 %v892, %v894
        %v896 = vadd.f32 %v892, %v895
        %vm897 = vweird.f32 %v591
        %vm898 = vweird.f32 %v892
        %vm899 = vmor %vm897, %vm898
        %v900 = vsel %vm899, %v892, %v896
        %v901 = vand.u32 2147483647, %v591
        %vm902 = vcmp.eq.f32.partialorder %v901, 8.507059e+37
        %v903 = vand.u32 %v591, 2147483648
        %v904 = vor.u32 1.1754944e-38, %v903
        %v905 = vsel %vm902, %v904, %v900
        %v906 = vmul.f32 %v477, %v905
        %v907 = vmul.f32 %v479, %v905
        %v908 = vmul.f32 %v481, %v905
        %v909 = vrcp.pop %v595
        %v910 = vmul.f32 %v595, %v909
        %v911 = vsub.f32 1.0, %v910
        %v912 = vmul.f32 %v909, %v911
        %v913 = vadd.f32 %v909, %v912
        %vm914 = vweird.f32 %v595
        %vm915 = vweird.f32 %v909
        %vm916 = vmor %vm914, %vm915
        %v917 = vsel %vm916, %v909, %v913
        %v918 = vand.u32 2147483647, %v595
        %vm919 = vcmp.eq.f32.partialorder %v918, 8.507059e+37
        %v920 = vand.u32 %v595, 2147483648
        %v921 = vor.u32 1.1754944e-38, %v920
        %v922 = vsel %vm919, %v921, %v917
        %v923 = vmul.f32 %v483, %v922
        %v924 = vmul.f32 %v485, %v922
        %v925 = vmul.f32 %v487, %v922
        %v926 = vrcp.pop %v599
        %v927 = vmul.f32 %v599, %v926
        %v928 = vsub.f32 1.0, %v927
        %v929 = vmul.f32 %v926, %v928
        %v930 = vadd.f32 %v926, %v929
        %vm931 = vweird.f32 %v599
        %vm932 = vweird.f32 %v926
        %vm933 = vmor %vm931, %vm932
        %v934 = vsel %vm933, %v926, %v930
        %v935 = vand.u32 2147483647, %v599
        %vm936 = vcmp.eq.f32.partialorder %v935, 8.507059e+37
        %v937 = vand.u32 %v599, 2147483648
        %v938 = vor.u32 1.1754944e-38, %v937
        %v939 = vsel %vm936, %v938, %v934
        %v940 = vmul.f32 %v489, %v939
        %v941 = vmul.f32 %v491, %v939
        %v942 = vmul.f32 %v493, %v939
        %v943 = vrcp.pop %v603
        %v944 = vmul.f32 %v603, %v943
        %v945 = vsub.f32 1.0, %v944
        %v946 = vmul.f32 %v943, %v945
        %v947 = vadd.f32 %v943, %v946
        %vm948 = vweird.f32 %v603
        %vm949 = vweird.f32 %v943
        %vm950 = vmor %vm948, %vm949
        %v951 = vsel %vm950, %v943, %v947
        %v952 = vand.u32 2147483647, %v603
        %vm953 = vcmp.eq.f32.partialorder %v952, 8.507059e+37
        %v954 = vand.u32 %v603, 2147483648
        %v955 = vor.u32 1.1754944e-38, %v954
        %v956 = vsel %vm953, %v955, %v951
        %v957 = vmul.f32 %v495, %v956
        %v958 = vmul.f32 %v497, %v956
        %v959 = vmul.f32 %v499, %v956
        %v960 = vrcp.pop %v607
        %v961 = vmul.f32 %v607, %v960
        %v962 = vsub.f32 1.0, %v961
        %v963 = vmul.f32 %v960, %v962
        %v964 = vadd.f32 %v960, %v963
        %vm965 = vweird.f32 %v607
        %vm966 = vweird.f32 %v960
        %vm967 = vmor %vm965, %vm966
        %v968 = vsel %vm967, %v960, %v964
        %v969 = vand.u32 2147483647, %v607
        %vm970 = vcmp.eq.f32.partialorder %v969, 8.507059e+37
        %v971 = vand.u32 %v607, 2147483648
        %v972 = vor.u32 1.1754944e-38, %v971
        %v973 = vsel %vm970, %v972, %v968
        %v974 = vmul.f32 %v501, %v973
        %v975 = vmul.f32 %v503, %v973
        %v976 = vmul.f32 %v505, %v973
        %v977 = vrcp.pop %v611
        %v978 = vmul.f32 %v611, %v977
        %v979 = vsub.f32 1.0, %v978
        %v980 = vmul.f32 %v977, %v979
        %v981 = vadd.f32 %v977, %v980
        %vm982 = vweird.f32 %v611
        %vm983 = vweird.f32 %v977
        %vm984 = vmor %vm982, %vm983
        %v985 = vsel %vm984, %v977, %v981
        %v986 = vand.u32 2147483647, %v611
        %vm987 = vcmp.eq.f32.partialorder %v986, 8.507059e+37
        %v988 = vand.u32 %v611, 2147483648
        %v989 = vor.u32 1.1754944e-38, %v988
        %v990 = vsel %vm987, %v989, %v985
        %v991 = vmul.f32 %v507, %v990
        %v992 = vmul.f32 %v509, %v990
        %v993 = vmul.f32 %v511, %v990
        %v994 = vrcp.pop %v615
        %v995 = vmul.f32 %v615, %v994
        %v996 = vsub.f32 1.0, %v995
        %v997 = vmul.f32 %v994, %v996
        %v998 = vadd.f32 %v994, %v997
        %vm999 = vweird.f32 %v615
        %vm1000 = vweird.f32 %v994
        %vm1001 = vmor %vm999, %vm1000
        %v1002 = vsel %vm1001, %v994, %v998
        %v1003 = vand.u32 2147483647, %v615
        %vm1004 = vcmp.eq.f32.partialorder %v1003, 8.507059e+37
        %v1005 = vand.u32 %v615, 2147483648
        %v1006 = vor.u32 1.1754944e-38, %v1005
        %v1007 = vsel %vm1004, %v1006, %v1002
        %v1008 = vmul.f32 %v513, %v1007
        %v1009 = vmul.f32 %v515, %v1007
        %v1010 = vmul.f32 %v517, %v1007
        %v1011 = vrcp.pop %v619
        %v1012 = vmul.f32 %v619, %v1011
        %v1013 = vsub.f32 1.0, %v1012
        %v1014 = vmul.f32 %v1011, %v1013
        %v1015 = vadd.f32 %v1011, %v1014
        %vm1016 = vweird.f32 %v619
        %vm1017 = vweird.f32 %v1011
        %vm1018 = vmor %vm1016, %vm1017
        %v1019 = vsel %vm1018, %v1011, %v1015
        %v1020 = vand.u32 2147483647, %v619
        %vm1021 = vcmp.eq.f32.partialorder %v1020, 8.507059e+37
        %v1022 = vand.u32 %v619, 2147483648
        %v1023 = vor.u32 1.1754944e-38, %v1022
        %v1024 = vsel %vm1021, %v1023, %v1019
        %v1025 = vmul.f32 %v519, %v1024
        %v1026 = vmul.f32 %v521, %v1024
        %v1027 = vmul.f32 %v523, %v1024
        %1028 = vst [vmem:[%s137] sm:$0xff] %v634
        %1029 = vst [vmem:[%s137 + $0x8] sm:$0xff] %v635
        %1030 = vst [vmem:[%s137 + $0x10] sm:$0xff] %v636
        %1031 = vst [vmem:[%s137 + $0x18] sm:$0xff] %v651
        %1032 = vst [vmem:[%s137 + $0x20] sm:$0xff] %v652
        %1033 = vst [vmem:[%s137 + $0x28] sm:$0xff] %v653
        %1034 = vst [vmem:[%s137 + $0x30] sm:$0xff] %v668
        %1035 = vst [vmem:[%s137 + $0x38] sm:$0xff] %v669
        %1036 = vst [vmem:[%s137 + $0x40] sm:$0xff] %v670
        %1037 = vst [vmem:[%s137 + $0x48] sm:$0xff] %v685
        %1038 = vst [vmem:[%s137 + $0x50] sm:$0xff] %v686
        %1039 = vst [vmem:[%s137 + $0x58] sm:$0xff] %v687
        %1040 = vst [vmem:[%s137 + $0x60] sm:$0xff] %v702
        %1041 = vst [vmem:[%s137 + $0x68] sm:$0xff] %v703
        %1042 = vst [vmem:[%s137 + $0x70] sm:$0xff] %v704
        %1043 = vst [vmem:[%s137 + $0x78] sm:$0xff] %v719
        %1044 = vst [vmem:[%s137 + $0x80] sm:$0xff] %v720
        %1045 = vst [vmem:[%s137 + $0x88] sm:$0xff] %v721
        %1046 = vst [vmem:[%s137 + $0x90] sm:$0xff] %v736
        %1047 = vst [vmem:[%s137 + $0x98] sm:$0xff] %v737
        %1048 = vst [vmem:[%s137 + $0xa0] sm:$0xff] %v738
        %1049 = vst [vmem:[%s137 + $0xa8] sm:$0xff] %v753
        %1050 = vst [vmem:[%s137 + $0xb0] sm:$0xff] %v754
        %1051 = vst [vmem:[%s137 + $0xb8] sm:$0xff] %v755
        %1052 = vst [vmem:[%s137 + $0xc0] sm:$0xff] %v770
        %1053 = vst [vmem:[%s137 + $0xc8] sm:$0xff] %v771
        %1054 = vst [vmem:[%s137 + $0xd0] sm:$0xff] %v772
        %1055 = vst [vmem:[%s137 + $0xd8] sm:$0xff] %v787
        %1056 = vst [vmem:[%s137 + $0xe0] sm:$0xff] %v788
        %1057 = vst [vmem:[%s137 + $0xe8] sm:$0xff] %v789
        %1058 = vst [vmem:[%s137 + $0xf0] sm:$0xff] %v804
        %1059 = vst [vmem:[%s137 + $0xf8] sm:$0xff] %v805
        %1060 = vst [vmem:[%s137 + $0x100] sm:$0xff] %v806
        %1061 = vst [vmem:[%s137 + $0x108] sm:$0xff] %v821
        %1062 = vst [vmem:[%s137 + $0x110] sm:$0xff] %v822
        %1063 = vst [vmem:[%s137 + $0x118] sm:$0xff] %v823
        %1064 = vst [vmem:[%s137 + $0x120] sm:$0xff] %v838
        %1065 = vst [vmem:[%s137 + $0x128] sm:$0xff] %v839
        %1066 = vst [vmem:[%s137 + $0x130] sm:$0xff] %v840
        %1067 = vst [vmem:[%s137 + $0x138] sm:$0xff] %v855
        %1068 = vst [vmem:[%s137 + $0x140] sm:$0xff] %v856
        %1069 = vst [vmem:[%s137 + $0x148] sm:$0xff] %v857
        %1070 = vst [vmem:[%s137 + $0x150] sm:$0xff] %v872
        %1071 = vst [vmem:[%s137 + $0x158] sm:$0xff] %v873
        %1072 = vst [vmem:[%s137 + $0x160] sm:$0xff] %v874
        %1073 = vst [vmem:[%s137 + $0x168] sm:$0xff] %v889
        %1074 = vst [vmem:[%s137 + $0x170] sm:$0xff] %v890
        %1075 = vst [vmem:[%s137 + $0x178] sm:$0xff] %v891
        %1076 = vst [vmem:[%s137 + $0x180] sm:$0xff] %v906
        %1077 = vst [vmem:[%s137 + $0x188] sm:$0xff] %v907
        %1078 = vst [vmem:[%s137 + $0x190] sm:$0xff] %v908
        %1079 = vst [vmem:[%s137 + $0x198] sm:$0xff] %v923
        %1080 = vst [vmem:[%s137 + $0x1a0] sm:$0xff] %v924
        %1081 = vst [vmem:[%s137 + $0x1a8] sm:$0xff] %v925
        %1082 = vst [vmem:[%s137 + $0x1b0] sm:$0xff] %v940
        %1083 = vst [vmem:[%s137 + $0x1b8] sm:$0xff] %v941
        %1084 = vst [vmem:[%s137 + $0x1c0] sm:$0xff] %v942
        %1085 = vst [vmem:[%s137 + $0x1c8] sm:$0xff] %v957
        %1086 = vst [vmem:[%s137 + $0x1d0] sm:$0xff] %v958
        %1087 = vst [vmem:[%s137 + $0x1d8] sm:$0xff] %v959
        %1088 = vst [vmem:[%s137 + $0x1e0] sm:$0xff] %v974
        %1089 = vst [vmem:[%s137 + $0x1e8] sm:$0xff] %v975
        %1090 = vst [vmem:[%s137 + $0x1f0] sm:$0xff] %v976
        %1091 = vst [vmem:[%s137 + $0x1f8] sm:$0xff] %v991
        %1092 = vst [vmem:[%s137 + $0x200] sm:$0xff] %v992
        %1093 = vst [vmem:[%s137 + $0x208] sm:$0xff] %v993
        %1094 = vst [vmem:[%s137 + $0x210] sm:$0xff] %v1008
        %1095 = vst [vmem:[%s137 + $0x218] sm:$0xff] %v1009
        %1096 = vst [vmem:[%s137 + $0x220] sm:$0xff] %v1010
        %1097 = vst [vmem:[%s137 + $0x228] sm:$0xff] %v1025
        %1098 = vst [vmem:[%s137 + $0x230] sm:$0xff] %v1026
        %1099 = vst [vmem:[%s137 + $0x238] sm:$0xff] %v1027
        %s1100 = sand.u32 %s52, 1
        %s1101 = scalar_lea.sflag [#allocation4], %s1100
        %s1102 = sand.u32 %s52, 1
        %s1103 = smul.addr %s1102, 576
        %s1104 = scalar_lea.vmem [#allocation5], %s1103
        // Predicated region
        $region29: #{tpu_custom_call.1} parent=23 // pred_check
          %p1105 = pneg %p62
        $region30: #{tpu_custom_call.1} parent=23 // pred_check_branch
          %1107 = sbr.rel (%p1105) target = $region32
        $region31: #{tpu_custom_call.1} parent=23 // pred_region
          %s1108 = smul.u32 24, %s18
          %1110 = vsyncadd %s1101, 0
          %s1111 = smul.addr %s1108, 3
          %s1112 = smul.addr %s1111, 8
          %s1113 = scalar_lea.hbm %s1, %s1112
          %s1114 = sshll.u32 %s1104, 4
          %s1115 = int_to_ptr.vmem [resolvable:$true] %s1114
          %s1116 = sshll.u32 %s1113, 4
          %s1117 = int_to_ptr.hbm [resolvable:$true] %s1116
          %1122 = dma.vmem_to_hbm [thread:$0]  %s1115, 9216, %s1117, %s1101, 384, 384, 24
        $region32: #{tpu_custom_call.1} parent=23 // pred_fallthru
          _
      $region24: #{tpu_custom_call.1} parent=5 // pred_fallthru
        _
      %p1123 = scmp.le.s32.totalorder 2, %s13
      // Predicated region
      $region33: #{tpu_custom_call.1} parent=5 // pred_check
        %p1124 = pneg %p1123
      $region34: #{tpu_custom_call.1} parent=5 // pred_check_branch
        %1126 = sbr.rel (%p1124) target = $region36
      $region35: #{tpu_custom_call.1} parent=5 // pred_region
        %s1127 = ssub.s32 %s13, 2
        // Predicated region
        $region37: #{tpu_custom_call.1} parent=35 // pred_check
          %p1128 = pneg %p68
        $region38: #{tpu_custom_call.1} parent=35 // pred_check_branch
          %1130 = sbr.rel (%p1128) target = $region40
        $region39: #{tpu_custom_call.1} parent=35 // pred_region
          %s1131 = sand.u32 %s53, 1
          %s1132 = scalar_lea.sflag [#allocation4], %s1131
          %s1133 = sand.u32 %s53, 1
          %s1134 = smul.addr %s1133, 576
          %s1135 = scalar_lea.vmem [#allocation5], %s1134
          %1137 = dma.done %s1132, 9216
        $region40: #{tpu_custom_call.1} parent=35 // pred_fallthru
          _
      $region36: #{tpu_custom_call.1} parent=5 // pred_fallthru
        _
    $region6: #{tpu_custom_call.1} parent=1 // loop_footer
      %s17 = sadd.s32 1, %s13
    $region7: #{tpu_custom_call.1} parent=1 // loop_footer_branch
      %12 = sbr.rel target = $region3
    $region8: #{tpu_custom_call.1} parent=1 // loop_exit
      _
    %1138 = vsyncpa [#allocation3], 1
    %s1139 = scalar_lea.sflag [#allocation3], 1
    %1140 = vsyncpa %s1139, 1
    %1141 = vsyncpa [#allocation4], 1
    %s1142 = scalar_lea.sflag [#allocation4], 1
    %1143 = vsyncpa %s1142, 1

</llo_original>
